<compile_context>
chip_gen: v7x
topology: tpu7x:2x2x1
jax: 0.10.0
libtpu: 0.0.40
codegen_flags: <defaults>
</compile_context>

<pallas_src>
import jax
import jax.numpy as jnp
from jax.experimental import pallas as pl
from jax.experimental.pallas import tpu as pltpu


def _round_up(x, m):
    return ((x + m - 1) // m) * m


def _make_kernel(TM):
    def kernel(ids_ref, need_ref, emb_hbm, wt_ref, b_ref, out_ref, gbuf, sem):
        # ids_ref : (n_pad,) int32 in SMEM (scalar prefetch) - flattened token ids
        # need_ref: (TM, 1)  f32   - 1.0 where token needs the mapper
        # emb_hbm : (V, H)   raw HBM ref (memory_space=pl.ANY) - embedding table
        # wt_ref  : (H, H)   bf16  - mapper.weight pre-transposed to (in, out)
        # b_ref   : (1, H)   f32   - mapper.bias
        # out_ref : (TM, H)  f32
        # gbuf    : (TM, H)  VMEM scratch, dtype == table dtype (gathered rows)
        # sem     : (1,) DMA semaphore
        i = pl.program_id(0)
        base = i * TM

        # ---- fused gather: DMA the TM embedding rows of this tile ----------
        @pl.loop(0, TM)
        def _issue(r):
            row = ids_ref[base + r]
            pltpu.make_async_copy(
                emb_hbm.at[pl.ds(row, 1), :],
                gbuf.at[pl.ds(r, 1), :],
                sem.at[0],
            ).start()

        @pl.loop(0, TM)
        def _drain(r):
            # one wait per issued row-copy (same-shaped descriptor -> matching
            # semaphore decrement); after the loop all rows have landed and
            # the semaphore is fully drained for the next grid step.
            pltpu.make_async_copy(
                emb_hbm.at[pl.ds(0, 1), :],
                gbuf.at[pl.ds(0, 1), :],
                sem.at[0],
            ).wait()

        # ---- mapper + per-token select --------------------------------------
        emb = gbuf[...]
        emb_f32 = emb.astype(jnp.float32)
        mapped = jnp.dot(emb.astype(jnp.bfloat16), wt_ref[...],
                         preferred_element_type=jnp.float32) + b_ref[...]
        out_ref[...] = jnp.where(need_ref[...] != 0.0, mapped, emb_f32)

    return kernel


def embed_and_map(token, bert_embedding, need_mapper, w, b, *, tm=1024):
    """Pallas implementation of general_model.forward's `vecs` construction:
       vecs[t] = mapper(bert_embedding[token[t]]) if NeedMapper[token[t]]
                 else bert_embedding[token[t]]
       reshaped back to token.shape + (H,)."""
    B, S = token.shape
    V, H = bert_embedding.shape
    flat_tok = token.reshape(-1).astype(jnp.int32)
    N = flat_tok.shape[0]

    # Token tile: as big as requested (sweep 1024-2048 on v5e/v6e), but shrink
    # for small N so the grid has >= 2 steps (keeps both v7x TCs busy).
    TM = min(int(tm), _round_up(N, 8))
    n_pad = _round_up(N, TM)
    if n_pad // TM < 2 and N > 8:
        TM = _round_up((N + 1) // 2, 8)
        n_pad = _round_up(N, TM)
    if n_pad != N:
        # pad only the tiny id vector (id 0 is a valid row); padded rows are
        # gathered/mapped harmlessly and sliced off below.
        flat_tok = jnp.pad(flat_tok, (0, n_pad - N))

    # Per-token mapper flag (tiny HBM stream; see TODO about folding in-kernel).
    need = jnp.take(need_mapper.astype(jnp.float32), flat_tok)[:, None]  # (n_pad, 1)

    # PyTorch Linear weight is (out, in); transpose ONCE and store bf16 so the
    # kernel matmul is the canonical bf16 MXU form with f32 accumulation.
    wt = jnp.transpose(w).astype(jnp.bfloat16)     # (in, out) = (H, H)
    b2 = b.reshape(1, H).astype(jnp.float32)

    grid = (n_pad // TM,)

    # Honest VMEM footprint: out tiles (f32, double-buffered) + need tiles
    # (lane-padded to 128, double-buffered) + bf16 weight (double-allocated) +
    # bias + single-buffer gather scratch in the table's native dtype.
    emb_isz = jnp.dtype(bert_embedding.dtype).itemsize
    est = (2 * TM * H * 4          # out tiles
           + 2 * TM * 128 * 4      # need tiles (lane-padded)
           + 2 * H * H * 2         # bf16 weight
           + 2 * 8 * H * 4         # bias (sublane-padded)
           + TM * H * emb_isz)     # gather scratch
    vmem_limit = int(min(max(int(est * 1.5), 8 << 20), 56 << 20))

    out = pl.pallas_call(
        _make_kernel(TM),
        out_shape=jax.ShapeDtypeStruct((n_pad, H), jnp.float32),
        grid_spec=pltpu.PrefetchScalarGridSpec(
            num_scalar_prefetch=1,                       # flat_tok -> SMEM
            grid=grid,
            in_specs=[
                pl.BlockSpec((TM, 1), lambda i, ids: (i, 0)),   # need flags (streamed)
                pl.BlockSpec(memory_space=pl.ANY),              # embedding table in HBM
                pl.BlockSpec((H, H), lambda i, ids: (0, 0)),    # w^T bf16 (loop-invariant)
                pl.BlockSpec((1, H), lambda i, ids: (0, 0)),    # bias (loop-invariant)
            ],
            out_specs=pl.BlockSpec((TM, H), lambda i, ids: (i, 0)),
            scratch_shapes=[
                pltpu.VMEM((TM, H), bert_embedding.dtype),      # gathered rows
                pltpu.SemaphoreType.DMA((1,)),
            ],
        ),
        compiler_params=pltpu.CompilerParams(
            dimension_semantics=("parallel",),
            vmem_limit_bytes=vmem_limit,
        ),
    )(flat_tok, need, bert_embedding, wt, b2)

    # NOTE: production H (768/1024) is a multiple of 128 -> lane-dense stores;
    # the toy H=32 below is only for the self-test.
    return out[:N].reshape(B, S, H)


def general_model_forward(token, mask, bert_embedding, need_mapper, w, b):
    vecs = embed_and_map(token, bert_embedding, need_mapper, w, b)
    # TODO(synk): self.forward_calc / accuracy_function are subclass hooks not
    #             defined in this module; return the constructed `vecs` (and
    #             pass mask through) instead.
    return vecs, mask


if __name__ == "__main__":
    key = jax.random.PRNGKey(0)
    B, S, H, V = 2, 8, 32, 64

    k_tok, k_emb, k_need, k_w, k_b = jax.random.split(key, 5)
    token = jax.random.randint(k_tok, (B, S), 0, V, dtype=jnp.int32)
    mask = jnp.ones((B, S), dtype=jnp.float32)
    bert_embedding = jax.random.normal(k_emb, (V, H), dtype=jnp.float32)
    need_mapper = jax.random.bernoulli(k_need, 0.5, (V,))
    # deterministic mapper (torch.nn.Linear(H, H)-shaped) parameters
    w = jax.random.normal(k_w, (H, H), dtype=jnp.float32) * (1.0 / jnp.sqrt(H))
    b = jax.random.normal(k_b, (H,), dtype=jnp.float32) * 0.01

    vecs, _ = general_model_forward(token, mask, bert_embedding, need_mapper, w, b)
    vecs = jax.block_until_ready(vecs)

    # reference check in plain JAX (mirrors the kernel's bf16 dot inputs with
    # f32 accumulation; passthrough rows must match the table exactly)
    emb_ref = jnp.take(bert_embedding, token.reshape(-1), axis=0)
    mapped_ref = jnp.dot(emb_ref.astype(jnp.bfloat16),
                         w.T.astype(jnp.bfloat16),
                         preferred_element_type=jnp.float32) + b
    need_ref = jnp.take(need_mapper, token.reshape(-1))[:, None]
    ref = jnp.where(need_ref, mapped_ref, emb_ref).reshape(B, S, H)
    assert vecs.shape == (B, S, H)
    assert jnp.allclose(vecs, ref, atol=2e-3, rtol=2e-3)

    print("KERNEL_OK")
</pallas_src>

<mosaic_0001>
module attributes {stable_mosaic.version = 11 : i64} {
  func.func @kernel(%arg0: i32, %arg1: memref<16xi32, #tpu.memory_space<smem>>, %arg2: memref<8x1xf32, #tpu.memory_space<vmem>>, %arg3: memref<64x32xf32, #tpu.memory_space<any>>, %arg4: memref<32x32xbf16, #tpu.memory_space<vmem>>, %arg5: memref<1x32xf32, #tpu.memory_space<vmem>>, %arg6: memref<8x32xf32, #tpu.memory_space<vmem>>, %arg7: memref<8x32xf32, #tpu.memory_space<vmem>>, %arg8: memref<1x!tpu.dma_semaphore, #tpu.memory_space<semaphore_mem>>) attributes {dimension_semantics = [#tpu.dimension_semantics<parallel>], iteration_bounds = array<i64: 2>, scalar_prefetch = 1 : i64, scratch_operands = 2 : i64, tpu.core_type = #tpu.core_type<tc>, window_params = [{transform_indices = @transform_0, window_bounds = array<i64: 8, 1>}, {}, {pipeline_mode = #tpu.pipeline_mode<synchronous>, transform_indices = @transform_2, window_bounds = array<i64: 32, 32>}, {pipeline_mode = #tpu.pipeline_mode<synchronous>, transform_indices = @transform_3, window_bounds = array<i64: 1, 32>}, {transform_indices = @transform_4, window_bounds = array<i64: 8, 32>}]} {
    %c8_i32 = arith.constant 8 : i32
    %0 = arith.muli %arg0, %c8_i32 : i32
    %c0_i32 = arith.constant 0 : i32
    %c8_i32_0 = arith.constant 8 : i32
    %1 = arith.addi %c0_i32, %c8_i32_0 : i32
    %c1_i32 = arith.constant 1 : i32
    scf.for %arg9 = %c0_i32 to %1 step %c1_i32  : i32 {
      %c1_i32_15 = arith.constant 1 : i32
      %17 = arith.muli %arg9, %c1_i32_15 : i32
      %c0_i32_16 = arith.constant 0 : i32
      %18 = arith.addi %c0_i32_16, %17 : i32
      %19 = arith.addi %0, %18 : i32
      %20 = arith.index_cast %19 : i32 to index
      %21 = memref.load %arg1[%20] : memref<16xi32, #tpu.memory_space<smem>>
      %c0_i32_17 = arith.constant 0 : i32
      %c0_i32_18 = arith.constant 0 : i32
      %22 = tpu.memref_slice %arg3[%21, %c0_i32_18] : memref<64x32xf32, #tpu.memory_space<any>> -> memref<1x32xf32, #tpu.memory_space<any>>
      %c0_i32_19 = arith.constant 0 : i32
      %23 = tpu.memref_slice %arg7[%18, %c0_i32_19] : memref<8x32xf32, #tpu.memory_space<vmem>> -> memref<1x32xf32, #tpu.memory_space<vmem>>
      %24 = tpu.memref_slice %arg8[%c0_i32_17] : memref<1x!tpu.dma_semaphore, #tpu.memory_space<semaphore_mem>> -> memref<1x!tpu.dma_semaphore, #tpu.memory_space<semaphore_mem>>
      %25 = tpu.memref_squeeze %24 : memref<1x!tpu.dma_semaphore, #tpu.memory_space<semaphore_mem>> -> memref<!tpu.dma_semaphore, #tpu.memory_space<semaphore_mem>>
      tpu.enqueue_dma source(%22 : memref<1x32xf32, #tpu.memory_space<any>>) target(%23 : memref<1x32xf32, #tpu.memory_space<vmem>>) target_semaphore(%25 : memref<!tpu.dma_semaphore, #tpu.memory_space<semaphore_mem>>)
    }
    %c8_i32_1 = arith.constant 8 : i32
    %c0_i32_2 = arith.constant 0 : i32
    %c8_i32_3 = arith.constant 8 : i32
    %2 = arith.addi %c0_i32_2, %c8_i32_3 : i32
    %c1_i32_4 = arith.constant 1 : i32
    scf.for %arg9 = %c0_i32_2 to %2 step %c1_i32_4  : i32 {
      %c0_i32_15 = arith.constant 0 : i32
      %c0_i32_16 = arith.constant 0 : i32
      %c0_i32_17 = arith.constant 0 : i32
      %17 = tpu.memref_slice %arg3[%c0_i32_16, %c0_i32_17] : memref<64x32xf32, #tpu.memory_space<any>> -> memref<1x32xf32, #tpu.memory_space<any>>
      %c0_i32_18 = arith.constant 0 : i32
      %c0_i32_19 = arith.constant 0 : i32
      %18 = tpu.memref_slice %arg7[%c0_i32_18, %c0_i32_19] : memref<8x32xf32, #tpu.memory_space<vmem>> -> memref<1x32xf32, #tpu.memory_space<vmem>>
      %19 = tpu.memref_slice %arg8[%c0_i32_15] : memref<1x!tpu.dma_semaphore, #tpu.memory_space<semaphore_mem>> -> memref<1x!tpu.dma_semaphore, #tpu.memory_space<semaphore_mem>>
      %20 = tpu.memref_squeeze %19 : memref<1x!tpu.dma_semaphore, #tpu.memory_space<semaphore_mem>> -> memref<!tpu.dma_semaphore, #tpu.memory_space<semaphore_mem>>
      tpu.wait_dma2 semaphore(%20 : memref<!tpu.dma_semaphore, #tpu.memory_space<semaphore_mem>>) src(%17 : memref<1x32xf32, #tpu.memory_space<any>>) dst(%18 : memref<1x32xf32, #tpu.memory_space<vmem>>)
    }
    %c0 = arith.constant 0 : index
    %c0_5 = arith.constant 0 : index
    %3 = vector.load %arg7[%c0, %c0_5] : memref<8x32xf32, #tpu.memory_space<vmem>>, vector<8x32xf32>
    %4 = arith.truncf %3 : vector<8x32xf32> to vector<8x32xbf16>
    %c0_6 = arith.constant 0 : index
    %c0_7 = arith.constant 0 : index
    %5 = vector.load %arg4[%c0_6, %c0_7] : memref<32x32xbf16, #tpu.memory_space<vmem>>, vector<32x32xbf16>
    %cst = arith.constant dense<0.000000e+00> : vector<8x32xf32>
    %6 = tpu.matmul %4, %5, %cst {dimension_numbers = #tpu.dot_dimension_numbers<[1], [0], [0], [1], [0, 0, 1, 1], [], []>} : vector<8x32xbf16>, vector<32x32xbf16>, vector<8x32xf32> -> vector<8x32xf32>
    %c0_8 = arith.constant 0 : index
    %c0_9 = arith.constant 0 : index
    %7 = vector.load %arg5[%c0_8, %c0_9] : memref<1x32xf32, #tpu.memory_space<vmem>>, vector<1x32xf32>
    %8 = vector.broadcast %7 : vector<1x32xf32> to vector<8x32xf32>
    %9 = arith.addf %6, %8 : vector<8x32xf32>
    %c0_10 = arith.constant 0 : index
    %c0_11 = arith.constant 0 : index
    %10 = vector.load %arg2[%c0_10, %c0_11] : memref<8x1xf32, #tpu.memory_space<vmem>>, vector<8x1xf32>
    %cst_12 = arith.constant 0.000000e+00 : f32
    %11 = vector.broadcast %cst_12 : f32 to vector<8x1xf32>
    %12 = arith.cmpf one, %10, %11 : vector<8x1xf32>
    %13 = vector.shape_cast %12 : vector<8x1xi1> to vector<8x1xi1>
    %14 = vector.broadcast %13 : vector<8x1xi1> to vector<8x32xi1>
    %15 = arith.select %14, %9, %3 : vector<8x32xi1>, vector<8x32xf32>
    %c0_13 = arith.constant 0 : index
    %c0_14 = arith.constant 0 : index
    %16 = vector.load %arg6[%c0_13, %c0_14] : memref<8x32xf32, #tpu.memory_space<vmem>>, vector<8x32xf32>
    tpu.vector_store %arg6[%c0_13, %c0_14], %15 {strides = array<i32>} : memref<8x32xf32, #tpu.memory_space<vmem>>, vector<8x32xf32>,
    return
  }
  func.func @transform_0(%arg0: i32, %arg1: memref<16xi32, #tpu.memory_space<smem>>) -> (i32, i32) {
    %c0_i32 = arith.constant 0 : i32
    %c0_i32_0 = arith.constant 0 : i32
    return %arg0, %c0_i32 : i32, i32
  }
  func.func @transform_2(%arg0: i32, %arg1: memref<16xi32, #tpu.memory_space<smem>>) -> (i32, i32) {
    %c0_i32 = arith.constant 0 : i32
    %c0_i32_0 = arith.constant 0 : i32
    %c0_i32_1 = arith.constant 0 : i32
    return %c0_i32, %c0_i32_0 : i32, i32
  }
  func.func @transform_3(%arg0: i32, %arg1: memref<16xi32, #tpu.memory_space<smem>>) -> (i32, i32) {
    %c0_i32 = arith.constant 0 : i32
    %c0_i32_0 = arith.constant 0 : i32
    %c0_i32_1 = arith.constant 0 : i32
    return %c0_i32, %c0_i32_0 : i32, i32
  }
  func.func @transform_4(%arg0: i32, %arg1: memref<16xi32, #tpu.memory_space<smem>>) -> (i32, i32) {
    %c0_i32 = arith.constant 0 : i32
    %c0_i32_0 = arith.constant 0 : i32
    return %arg0, %c0_i32 : i32, i32
  }
}

</mosaic_0001>

<llo_original>
// kernel: tpu_custom_call.1
$region0: #{tpu_custom_call.1}
  #allocation0 [shape = 'u32[]', space=smem, size = 0x4, offset = 0x4, fixed_abs, tag = 'smem constant byte address 0x4 - core index']
  #allocation1 [shape = 'u32[144,128]{1,0:T(1,128)}', space=vmem, size = 0x12000, scoped, tag = 'internal scratch']
  #allocation2 [shape = 'f32[8,32]{1,0:T(8,128)}', space=vmem, size = 0x1000, scoped, tag = 'scratch operand']
  #allocation3 [shape = 's32[1]{0}', space=sflag, size = 0x4, scoped, tag = 'scratch operand']
  #allocation4 [shape = 's32[1]{0}', space=sflag, size = 0x4, scoped, tag = 'scoped memory for tpu_custom_call.1']
  #allocation5 [shape = 'u8[512]{0}', space=smem, size = 0x200, scoped, tag = 'prefetched SMEM operand 0']
  #allocation8 [shape = 's32[]', space=sflag, size = 0x4, offset = 0, fixed_abs, tag = 'sflag constant byte address 0x0 - dummy sync flag']
  %s0 = inlined_call_operand.vmem [shape: s32[16], index: 0, kind: input, shape index: {}]
  %s1 = inlined_call_operand.vmem [shape: f32[16,1], index: 1, kind: input, shape index: {}]
  %s2 = inlined_call_operand.vmem [shape: f32[64,32], index: 2, kind: input, shape index: {}]
  %s3 = inlined_call_operand.vmem [shape: bf16[32,32], index: 3, kind: input, shape index: {}]
  %s4 = inlined_call_operand.vmem [shape: f32[1,32], index: 4, kind: input, shape index: {}]
  %s5 = inlined_call_operand.hbm [shape: f32[16,32], index: 5, kind: output, shape index: {}]
  %s6 = sld [smem:[#allocation0]]
  $region89: #{tpu_custom_call.1} parent=0
    _
  %s8 = ssub.s32 1, %s6
  %s9 = scalar_select 0, %s8, %s6
  %s10 = sshll.u32 %s0, 4
  %s11 = int_to_ptr.vmem [resolvable:$true] %s10
  %13 = dma.vmem_to_smem %s11, 16, [#allocation5], [#allocation4]
  %14 = dma.done [#allocation4], 16
  %15 = sfence
  $region1: #{tpu_custom_call.1} parent=0
    #allocation6 [shape = 'u8[8192]{0}', space=vmem, size = 0x2000, scoped, tag = 'output window, operand 0']
    #allocation7 [shape = 's32[2]{0}', space=sflag, size = 0x8, scoped, tag = 'scoped memory for tpu_custom_call.1']
    %16 = vsyncpa [#allocation7], 0
    %s17 = scalar_lea.sflag [#allocation7], 1
    %18 = vsyncpa %s17, 0
    loop: start=0, step=1, limit=4
    $region2: #{tpu_custom_call.1} parent=1 // loop_pre_header
      _
    $region3: #{tpu_custom_call.1} parent=1 // loop_header
      %s20 = sphi 0, %s24
      %p21 = scmp.ge.s32.totalorder %s20, 4
      %s30 = sphi 0, %s32
      %s33 = sphi 0, %s30
      %s34 = sphi 0, %s33
      %s50 = sphi 0, %s34
      %s54 = sphi 0, %s54
      %s56 = sphi 0, %s54
      %s57 = sphi 0, %s56
      %s71 = sphi 0, %s57
      %s75 = sphi 0, %s75
      %s77 = sphi 0, %s75
      %s78 = sphi 0, %s77
      %s92 = sphi 0, %s78
      %s98 = sphi 0, %s100
      %s101 = sphi 0, %s98
      %s102 = sphi 0, %s101
      %s118 = sphi 0, %s102
    $region4: #{tpu_custom_call.1} parent=1 // loop_header_branch
      %23 = sbr.rel (%p21) target = $region8
    $region5: #{tpu_custom_call.1} parent=1 // loop_body
      %s25 = ssub.s32 %s20, 1
      %s26 = ssub.s32 %s20, 2
      %s27 = sadd.s32 %s20, 1
      %s28 = ssub.s32 %s20, %s27
      %p29 = scmp.eq.s32.totalorder %s28, 0
      %s31 = sadd.s32 %s30, 1
      %s32 = scalar_select %p29, %s30, %s31
      %p35 = pneg %p29
      %p36 = scmp.eq.s32.totalorder %s20, 1
      %p37 = por %p35, %p36
      %p38 = scmp.ne.s32.totalorder %s30, %s33
      %p39 = scmp.eq.s32.totalorder %s20, 0
      %p40 = por %p38, %p39
      %p41 = scmp.ne.s32.totalorder %s30, %s33
      %p42 = scmp.eq.s32.totalorder %s25, 1
      %p43 = por %p41, %p42
      %p44 = scmp.ne.s32.totalorder %s33, %s34
      %p45 = scmp.eq.s32.totalorder %s25, 0
      %p46 = por %p44, %p45
      %p47 = scmp.ne.s32.totalorder %s33, %s34
      %p48 = scmp.eq.s32.totalorder %s26, 1
      %p49 = por %p47, %p48
      %p51 = scmp.ne.s32.totalorder %s34, %s50
      %p52 = scmp.eq.s32.totalorder %s26, 0
      %p53 = por %p51, %p52
      %s55 = sadd.s32 %s54, 1
      %p58 = scmp.eq.s32.totalorder %s20, 1
      %p59 = scmp.ne.s32.totalorder %s54, %s56
      %p60 = scmp.eq.s32.totalorder %s20, 0
      %p61 = por %p59, %p60
      %p62 = scmp.ne.s32.totalorder %s54, %s56
      %p63 = scmp.eq.s32.totalorder %s25, 1
      %p64 = por %p62, %p63
      %p65 = scmp.ne.s32.totalorder %s56, %s57
      %p66 = scmp.eq.s32.totalorder %s25, 0
      %p67 = por %p65, %p66
      %p68 = scmp.ne.s32.totalorder %s56, %s57
      %p69 = scmp.eq.s32.totalorder %s26, 1
      %p70 = por %p68, %p69
      %p72 = scmp.ne.s32.totalorder %s57, %s71
      %p73 = scmp.eq.s32.totalorder %s26, 0
      %p74 = por %p72, %p73
      %s76 = sadd.s32 %s75, 1
      %p79 = scmp.eq.s32.totalorder %s20, 1
      %p80 = scmp.ne.s32.totalorder %s75, %s77
      %p81 = scmp.eq.s32.totalorder %s20, 0
      %p82 = por %p80, %p81
      %p83 = scmp.ne.s32.totalorder %s75, %s77
      %p84 = scmp.eq.s32.totalorder %s25, 1
      %p85 = por %p83, %p84
      %p86 = scmp.ne.s32.totalorder %s77, %s78
      %p87 = scmp.eq.s32.totalorder %s25, 0
      %p88 = por %p86, %p87
      %p89 = scmp.ne.s32.totalorder %s77, %s78
      %p90 = scmp.eq.s32.totalorder %s26, 1
      %p91 = por %p89, %p90
      %p93 = scmp.ne.s32.totalorder %s78, %s92
      %p94 = scmp.eq.s32.totalorder %s26, 0
      %p95 = por %p93, %p94
      %s96 = ssub.s32 %s20, %s27
      %p97 = scmp.eq.s32.totalorder %s96, 0
      %s99 = sadd.s32 %s98, 1
      %s100 = scalar_select %p97, %s98, %s99
      %p103 = pneg %p97
      %p104 = scmp.eq.s32.totalorder %s20, 1
      %p105 = por %p103, %p104
      %p106 = scmp.ne.s32.totalorder %s98, %s101
      %p107 = scmp.eq.s32.totalorder %s20, 0
      %p108 = por %p106, %p107
      %p109 = scmp.ne.s32.totalorder %s98, %s101
      %p110 = scmp.eq.s32.totalorder %s25, 1
      %p111 = por %p109, %p110
      %p112 = scmp.ne.s32.totalorder %s101, %s102
      %p113 = scmp.eq.s32.totalorder %s25, 0
      %p114 = por %p112, %p113
      %p115 = scmp.ne.s32.totalorder %s101, %s102
      %p116 = scmp.eq.s32.totalorder %s26, 1
      %p117 = por %p115, %p116
      %p119 = scmp.ne.s32.totalorder %s102, %s118
      %p120 = scmp.eq.s32.totalorder %s26, 0
      %p121 = por %p119, %p120
      %p122 = scmp.le.s32.totalorder 1, %s20
      %p123 = scmp.lt.s32.totalorder %s20, 3
      %p124 = pnand %p122, %p123
      %p125 = pneg %p124
      // Predicated region
      $region9: #{tpu_custom_call.1} parent=5 // pred_check
        _
      $region10: #{tpu_custom_call.1} parent=5 // pred_check_branch
        %127 = sbr.rel (%p124) target = $region12
      $region11: #{tpu_custom_call.1} parent=5 // pred_region
        %s128 = ssub.s32 %s20, 1
        // Predicated region
        $region13: #{tpu_custom_call.1} parent=11 // pred_check
          %p129 = pneg %p67
        $region14: #{tpu_custom_call.1} parent=11 // pred_check_branch
          %131 = sbr.rel (%p129) target = $region16
        $region15: #{tpu_custom_call.1} parent=11 // pred_region
          _
        $region16: #{tpu_custom_call.1} parent=11 // pred_fallthru
          _
        // Predicated region
        $region17: #{tpu_custom_call.1} parent=11 // pred_check
          %p132 = pneg %p88
        $region18: #{tpu_custom_call.1} parent=11 // pred_check_branch
          %134 = sbr.rel (%p132) target = $region20
        $region19: #{tpu_custom_call.1} parent=11 // pred_region
          _
        $region20: #{tpu_custom_call.1} parent=11 // pred_fallthru
          _
      $region12: #{tpu_custom_call.1} parent=5 // pred_fallthru
        _
      %p135 = scmp.lt.s32.totalorder %s20, 2
      // Predicated region
      $region21: #{tpu_custom_call.1} parent=5 // pred_check
        %p136 = pneg %p135
      $region22: #{tpu_custom_call.1} parent=5 // pred_check_branch
        %138 = sbr.rel (%p136) target = $region24
      $region23: #{tpu_custom_call.1} parent=5 // pred_region
        // Predicated region
        $region25: #{tpu_custom_call.1} parent=23 // pred_check
          %p139 = pneg %p40
        $region26: #{tpu_custom_call.1} parent=23 // pred_check_branch
          %141 = sbr.rel (%p139) target = $region28
        $region27: #{tpu_custom_call.1} parent=23 // pred_region
          %p142 = scmp.lt.s32.totalorder %s20, 1
          %s143 = scalar_select %p142, %s20, 1
          %s144 = smul.addr %s143, 8
          %s145 = scalar_lea.vmem %s1, %s144
        $region28: #{tpu_custom_call.1} parent=23 // pred_fallthru
          _
      $region24: #{tpu_custom_call.1} parent=5 // pred_fallthru
        _
      %p146 = scmp.le.s32.totalorder 1, %s20
      %p147 = scmp.lt.s32.totalorder %s20, 3
      %p148 = pnand %p146, %p147
      %p149 = pneg %p148
      // Predicated region
      $region29: #{tpu_custom_call.1} parent=5 // pred_check
        _
      $region30: #{tpu_custom_call.1} parent=5 // pred_check_branch
        %151 = sbr.rel (%p148) target = $region32
      $region31: #{tpu_custom_call.1} parent=5 // pred_region
        %s152 = ssub.s32 %s20, 1
        %p153 = scmp.lt.s32.totalorder %s25, 1
        %s154 = scalar_select %p153, %s25, 1
        %s155 = smul.addr %s154, 8
        %s156 = scalar_lea.vmem %s1, %s155
        %p157 = pneg %p46
        %p158 = pneg %p43
        %p159 = pneg %p67
        %p160 = pneg %p64
        %p161 = pneg %p88
        %p162 = pneg %p85
        %p163 = pneg %p114
        %p164 = pneg %p111
        %s165 = sand.u32 %s101, 1
        %s166 = scalar_lea.sflag [#allocation7], %s165
        %s167 = sand.u32 %s101, 1
        %s168 = smul.addr %s167, 8
        %s169 = scalar_lea.vmem [#allocation6], %s168
        %p170 = scmp.lt.s32.totalorder %s25, 1
        %s171 = scalar_select %p170, %s25, 1
        %s172 = smul.addr %s171, 8
        %s173 = scalar_lea.vmem %s1, %s172
        %s175 = smul.u32 %s25, 8
        loop: start=0, step=1, limit=8
        $region33: #{tpu_custom_call.1} parent=31 // loop_pre_header
          _
        $region34: #{tpu_custom_call.1} parent=31 // loop_header
          %s177 = sphi 0, %s181
          %p178 = scmp.ge.s32.totalorder %s177, 8
        $region35: #{tpu_custom_call.1} parent=31 // loop_header_branch
          %180 = sbr.rel (%p178) target = $region39
        $region36: #{tpu_custom_call.1} parent=31 // loop_body
          %s182 = sadd.s32 %s175, %s177
          %s183 = sld [smem:[#allocation5 + %s182]]
          %s184 = scalar_lea.vmem %s2, %s183
          %s185 = scalar_lea.vmem [#allocation2], %s177
          %p187 = scmp.lt.u32.totalorder 1, 8
          %p188 = pneg %p187
          // Predicated region
          $region40: #{tpu_custom_call.1} parent=36 // pred_check
            _
          $region41: #{tpu_custom_call.1} parent=36 // pred_check_branch
            %190 = sbr.rel (%p187) target = $region43
          $region42: #{tpu_custom_call.1} parent=36 // pred_region
            %s205 = sand.u32 1, 7
            %p206 = scmp.eq.s32.totalorder %s205, 0
            %p207 = pneg %p206
            // Predicated region
            $region55: #{tpu_custom_call.1} parent=42 // pred_check
              _
            $region56: #{tpu_custom_call.1} parent=42 // pred_check_branch
              %209 = sbr.rel (%p206) target = $region58
            $region57: #{tpu_custom_call.1} parent=42 // pred_region
              %s210 = sand.u32 1, 7
              %s211 = ssub.s32 1, %s210
              %s212 = scalar_lea.vmem %s184, %s211
              %s213 = ssub.s32 1, %s210
              %s214 = scalar_lea.vmem %s185, %s213 [#allocation2]
              %s215 = sshllo.u32 0, %s210
              loop: start=0, step=1, limit=1
              $region59: #{tpu_custom_call.1} parent=57 // loop_pre_header
                _
              $region60: #{tpu_custom_call.1} parent=57 // loop_header
                %s217 = sphi 0, %s221
                %p218 = scmp.ge.s32.totalorder %s217, 1
                %s222 = sphi %s212, %s212
                %s223 = sphi %s214, %s214
              $region61: #{tpu_custom_call.1} parent=57 // loop_header_branch
                %220 = sbr.rel (%p218) target = $region65
              $region62: #{tpu_custom_call.1} parent=57 // loop_body
                %v224 = vld [vmem:[%s222] sm:%s215]
                %225 = vst [vmem:[%s223] sm:%s215] %v224
              $region63: #{tpu_custom_call.1} parent=57 // loop_footer
                %s221 = sadd.s32 1, %s217
              $region64: #{tpu_custom_call.1} parent=57 // loop_footer_branch
                %216 = sbr.rel target = $region60
              $region65: #{tpu_custom_call.1} parent=57 // loop_exit
                _
            $region58: #{tpu_custom_call.1} parent=42 // pred_fallthru
              _
          $region43: #{tpu_custom_call.1} parent=36 // pred_fallthru
            _
          // Predicated region
          $region44: #{tpu_custom_call.1} parent=36 // pred_check
            %p191 = pneg %p187
          $region45: #{tpu_custom_call.1} parent=36 // pred_check_branch
            %193 = sbr.rel (%p191) target = $region47
          $region46: #{tpu_custom_call.1} parent=36 // pred_region
            %s194 = sshllo.u32 0, 1
            loop: start=0, step=1, limit=1
            $region48: #{tpu_custom_call.1} parent=46 // loop_pre_header
              _
            $region49: #{tpu_custom_call.1} parent=46 // loop_header
              %s196 = sphi 0, %s200
              %p197 = scmp.ge.s32.totalorder %s196, 1
              %s201 = sphi %s184, %s184
              %s202 = sphi %s185, %s185
            $region50: #{tpu_custom_call.1} parent=46 // loop_header_branch
              %199 = sbr.rel (%p197) target = $region54
            $region51: #{tpu_custom_call.1} parent=46 // loop_body
              %v203 = vld [vmem:[%s201] sm:%s194]
              %204 = vst [vmem:[%s202] sm:%s194] %v203
            $region52: #{tpu_custom_call.1} parent=46 // loop_footer
              %s200 = sadd.s32 1, %s196
            $region53: #{tpu_custom_call.1} parent=46 // loop_footer_branch
              %195 = sbr.rel target = $region49
            $region54: #{tpu_custom_call.1} parent=46 // loop_exit
              _
          $region47: #{tpu_custom_call.1} parent=36 // pred_fallthru
            _
          // Predicated region
          $region66: #{tpu_custom_call.1} parent=36 // pred_check
            _
          $region67: #{tpu_custom_call.1} parent=36 // pred_check_branch
            %228 = sbr.rel (0) target = $region69
          $region68: #{tpu_custom_call.1} parent=36 // pred_region
            %229 = vsyncadd [#allocation3], 16
          $region69: #{tpu_custom_call.1} parent=36 // pred_fallthru
            _
        $region37: #{tpu_custom_call.1} parent=31 // loop_footer
          %s181 = sadd.s32 1, %s177
        $region38: #{tpu_custom_call.1} parent=31 // loop_footer_branch
          %176 = sbr.rel target = $region34
        $region39: #{tpu_custom_call.1} parent=31 // loop_exit
          _
        loop: start=0, step=1, limit=8
        $region70: #{tpu_custom_call.1} parent=31 // loop_pre_header
          _
        $region71: #{tpu_custom_call.1} parent=31 // loop_header
          %s231 = sphi 0, %s235
          %p232 = scmp.ge.s32.totalorder %s231, 8
        $region72: #{tpu_custom_call.1} parent=31 // loop_header_branch
          %234 = sbr.rel (%p232) target = $region76
        $region73: #{tpu_custom_call.1} parent=31 // loop_body
          %s236 = smul.u32 1, 1
          %s237 = sshll.u32 %s236, 4
          %238 = dma.done [#allocation3], %s237
        $region74: #{tpu_custom_call.1} parent=31 // loop_footer
          %s235 = sadd.s32 1, %s231
        $region75: #{tpu_custom_call.1} parent=31 // loop_footer_branch
          %230 = sbr.rel target = $region71
        $region76: #{tpu_custom_call.1} parent=31 // loop_exit
          _
        %v239 = vld [vmem:[#allocation2] sm:$0xff]
        %v240 = vpack.c.bf16 %v239, %v239
        %v241 = vld [vmem:[%s3] sm:$0xf]
        %v242 = vld [vmem:[%s3 + $0x4] sm:$0xf]
        %v243 = vld [vmem:[%s3 + $0x8] sm:$0xf]
        %v244 = vld [vmem:[%s3 + $0xc] sm:$0xf]
        %v245 = vld [vmem:[%s4] sm:$0x1]
        %v247 = vlaneseq
        %v248 = vshrl.u32 %v247, 7
        %v249 = vsub.s32 0, %v248
        %v250 = vrot.slane %v245, %v249
        %v256 = vunpack.c.l.b16 %v241
        %v257 = vunpack.c.l.b16 %v242
        %v258 = vunpack.c.l.b16 %v243
        %v259 = vunpack.c.l.b16 %v244
        %v260 = vpack.c.b16 %v257, %v256
        %v261 = vpack.c.b16 %v259, %v258
        %vm264 = vcmask 261120
        %v266 = vsel %vm264, %v240, 0
        %268 = vmatprep.subr.bf16.mxu0 0
        %269 = vmatpush1.bf16.msra.mxu0 %v260
        %270 = vmatprep.subr.bf16.mxu0 0
        %271 = vmatpush1.bf16.msra.mxu0 %v261
        %272 = vmatprep.subr.bf16.mxu0 0
        %273 = vmatpush1.bf16.msra.mxu0 0
        %274 = vmatprep.subr.bf16.mxu0 0
        %275 = vmatpush1.bf16.msra.mxu0 0
        %276 = vmatprep.subr.bf16.mxu0 0
        %277 = vmatpush1.bf16.msra.mxu0 0
        %278 = vmatprep.subr.bf16.mxu0 0
        %279 = vmatpush1.bf16.msra.mxu0 0
        %280 = vmatprep.subr.bf16.mxu0 0
        %281 = vmatpush1.bf16.msra.mxu0 0
        %282 = vmatprep.subr.bf16.mxu0 0
        %283 = vmatpush1.bf16.msra.mxu0 0
        %284 = vmatprep.subr.bf16.mxu0 0
        %285 = vmatpush1.bf16.msra.mxu0 0
        %286 = vmatprep.subr.bf16.mxu0 0
        %287 = vmatpush1.bf16.msra.mxu0 0
        %288 = vmatprep.subr.bf16.mxu0 0
        %289 = vmatpush1.bf16.msra.mxu0 0
        %290 = vmatprep.subr.bf16.mxu0 0
        %291 = vmatpush1.bf16.msra.mxu0 0
        %292 = vmatprep.subr.bf16.mxu0 0
        %293 = vmatpush1.bf16.msra.mxu0 0
        %294 = vmatprep.subr.bf16.mxu0 0
        %295 = vmatpush1.bf16.msra.mxu0 0
        %296 = vmatprep.subr.bf16.mxu0 0
        %297 = vmatpush1.bf16.msra.mxu0 0
        %298 = vmatprep.subr.bf16.mxu0 0
        %299 = vmatpush1.bf16.msra.mxu0 0
        %300 = vmatprep.mubr.bf16.mxu0 0
        %301 = vmatmul.mubr.bf16.gmra.mrb[0].mxu0 %v266
        %v302 = vpop.f32.mrb[0].mxu0
        %v303 = vadd.f32 %v250, %v302
        %v304 = vpop.f32.mrb[0].mxu0
        %v305 = vpop.f32.mrb[0].mxu0
        %v306 = vpop.f32.mrb[0].mxu0
        %307 = vdwg.mxu0
        %v308 = vld [vmem:[%s173] sm:$0xff]
        %vm309 = vcmp.ne.f32.partialorder %v308, 0.0
        %v310 = vsel %vm309, 1, 0
        %311 = vset.pattern.permute.xlu0 0
        %312 = vperm.xlu0 %311, %v310
        %v313 = vpop.permute.xlu0 %312
        %vm314 = vcmp.eq.s32.totalorder %v313, 1
        %v315 = vsel %vm314, %v303, %v239
        %316 = vst.msk [vmem:[%s169] sm:$0xff] %vm264, %v315
        %s317 = sand.u32 %s101, 1
        %s318 = scalar_lea.sflag [#allocation7], %s317
        %s319 = sand.u32 %s101, 1
        %s320 = smul.addr %s319, 8
        %s321 = scalar_lea.vmem [#allocation6], %s320
        // Predicated region
        $region77: #{tpu_custom_call.1} parent=31 // pred_check
          %p322 = pneg %p111
        $region78: #{tpu_custom_call.1} parent=31 // pred_check_branch
          %324 = sbr.rel (%p322) target = $region80
        $region79: #{tpu_custom_call.1} parent=31 // pred_region
          %s326 = ssub.s32 128, 128
          %327 = vsyncadd %s318, %s326
          %s328 = smul.addr %s25, 128
          %s329 = scalar_lea.hbm %s5, %s328
          %s331 = sshll.u32 %s321, 4
          %s332 = int_to_ptr.vmem [resolvable:$true] %s331
          %334 = dma.vmem_to_hbm [thread:$0]  %s332, 128, %s329, %s318
        $region80: #{tpu_custom_call.1} parent=31 // pred_fallthru
          _
      $region32: #{tpu_custom_call.1} parent=5 // pred_fallthru
        _
      %p335 = scmp.le.s32.totalorder 2, %s20
      // Predicated region
      $region81: #{tpu_custom_call.1} parent=5 // pred_check
        %p336 = pneg %p335
      $region82: #{tpu_custom_call.1} parent=5 // pred_check_branch
        %338 = sbr.rel (%p336) target = $region84
      $region83: #{tpu_custom_call.1} parent=5 // pred_region
        %s339 = ssub.s32 %s20, 2
        // Predicated region
        $region85: #{tpu_custom_call.1} parent=83 // pred_check
          %p340 = pneg %p117
        $region86: #{tpu_custom_call.1} parent=83 // pred_check_branch
          %342 = sbr.rel (%p340) target = $region88
        $region87: #{tpu_custom_call.1} parent=83 // pred_region
          %s343 = sand.u32 %s102, 1
          %s344 = scalar_lea.sflag [#allocation7], %s343
          %s345 = sand.u32 %s102, 1
          %s346 = smul.addr %s345, 8
          %s347 = scalar_lea.vmem [#allocation6], %s346
          %348 = dma.done %s344, 128
        $region88: #{tpu_custom_call.1} parent=83 // pred_fallthru
          _
      $region84: #{tpu_custom_call.1} parent=5 // pred_fallthru
        _
    $region6: #{tpu_custom_call.1} parent=1 // loop_footer
      %s24 = sadd.s32 1, %s20
    $region7: #{tpu_custom_call.1} parent=1 // loop_footer_branch
      %19 = sbr.rel target = $region3
    $region8: #{tpu_custom_call.1} parent=1 // loop_exit
      _
    %349 = vsyncpa [#allocation7], 1
    %s350 = scalar_lea.sflag [#allocation7], 1
    %351 = vsyncpa %s350, 1
  %352 = vsyncmov [#allocation3]
  %s353 = vpop.sfrf %352
  %p354 = scmp.eq.s32.totalorder %s353, 0
  %p355 = pneg %p354
  %357 = shalt.err (%p355)

</llo_original>
